<compile_context>
chip_gen: v7x
topology: tpu7x:2x2x1
jax: 0.10.0
libtpu: 0.0.40
codegen_flags: <defaults>
</compile_context>

<pallas_src>
import functools

import jax
import jax.numpy as jnp
from jax.experimental import pallas as pl
from jax.experimental.pallas import tpu as pltpu

MARGIN = 0.05          # TripletMarginLoss default
EPS = 1e-12            # F.normalize eps
_BIG = 1e30            # finite sentinel for masked min/max (|cos| <= 1)


def _round_up(x, m):
    return (x + m - 1) // m * m


def _pick_tile(n, max_tile, align):
    """Tile size <= ~max_tile (aligned) minimizing padding; returns (tile, n_pad)."""
    ntiles = -(-n // max_tile)
    if ntiles == 1:
        tile = _round_up(n, 8)                 # single full-extent tile
    else:
        tile = _round_up(-(-n // ntiles), align)
    n_pad = tile * (-(-n // tile))
    return tile, n_pad


# ---------------------------------------------------------------------------
# Kernel: cosine-similarity block + batch-hard mining + per-anchor triplet loss
# ---------------------------------------------------------------------------
def _hard_triplet_kernel(xa_ref, xc_ref, la_ref, lc_ref, loss_ref,
                         ap_ref, an_ref, *, n_valid, margin):
    """One (candidate-tile x anchor-tile) block of the similarity matrix.

    Anchors live on the lane axis (columns), candidates on the sublane axis
    (rows): per-anchor reductions and the final loss land in lane-dense
    (1, TM) vectors -> unmasked vector stores.
    """
    tn = xc_ref.shape[0]
    tm = xa_ref.shape[0]
    i = pl.program_id(0)              # anchor tile   ("parallel")
    j = pl.program_id(1)              # candidate tile ("arbitrary", reduction)

    @pl.when(j == 0)
    def _():
        ap_ref[...] = jnp.full(ap_ref.shape, _BIG, ap_ref.dtype)
        an_ref[...] = jnp.full(an_ref.shape, -_BIG, an_ref.dtype)

    # Cosine-similarity block (tn, tm) on the MXU; inputs are pre-normalized
    # in the wrapper, f32 accumulation.
    s = jax.lax.dot_general(xc_ref[...], xa_ref[...],
                            (((1,), (1,)), ((), ())),
                            preferred_element_type=jnp.float32)

    la = la_ref[...]                  # (1, tm)  anchor labels
    lc = lc_ref[...]                  # (tn, 1)  candidate labels (-1 = padding)
    same = lc == la                   # (tn, tm)

    cand_idx = j * tn + jax.lax.broadcasted_iota(jnp.int32, (tn, 1), 0)
    anch_idx = i * tm + jax.lax.broadcasted_iota(jnp.int32, (1, tm), 1)

    # Positives: same label, not the anchor itself.  Padded candidates carry
    # label -1 (< every shifted real label) so `same` already rejects them.
    pos_mask = same & (cand_idx != anch_idx)
    # Negatives: different label, excluding padded candidates (cheap (tn,1) cmp).
    neg_mask = (~same) & (lc >= 0)

    # Batch-hard mining: running per-anchor extreme similarities, (1, tm).
    ap_ref[...] = jnp.minimum(
        ap_ref[...],
        jnp.min(jnp.where(pos_mask, s, _BIG), axis=0, keepdims=True))
    an_ref[...] = jnp.maximum(
        an_ref[...],
        jnp.max(jnp.where(neg_mask, s, -_BIG), axis=0, keepdims=True))

    @pl.when(j == pl.num_programs(1) - 1)
    def _():
        ap = ap_ref[...]
        an = an_ref[...]
        # Sentinel untouched => anchor had no positive / no negative.
        valid = (ap < 0.5 * _BIG) & (an > -0.5 * _BIG) & (anch_idx < n_valid)
        loss_ref[...] = jnp.where(
            valid, jnp.maximum(an - ap + margin, 0.0), 0.0)


# ---------------------------------------------------------------------------
# Wrapper
# ---------------------------------------------------------------------------
def triplet_loss(x, labels, *, margin=MARGIN, block_anchors=128,
                 block_cands=512, matmul_dtype=jnp.float32):
    """TripletMarginLoss(CosineSimilarity) with BatchHardMiner, hard triplets.

    matmul_dtype=jnp.bfloat16 runs the MXU in bf16 (f32 accumulate) for ~3x
    matmul throughput; default f32 keeps exact parity with the PyTorch spec.
    """
    n, d = x.shape

    # ---- hoisted once-per-call preprocessing (single fused XLA pass) --------
    x = x.astype(jnp.float32)
    xn = x / jnp.maximum(jnp.linalg.norm(x, axis=-1, keepdims=True), EPS)
    xn = xn.astype(matmul_dtype)
    labels = labels.astype(jnp.int32)
    labels = labels - jnp.min(labels)          # >= 0, so -1 is a safe pad value

    # Anchor tiles sit on the lane axis (multiple of 128 unless single tile);
    # candidate tiles on the sublane axis (multiple of 8).  Padded separately.
    tm, n_pad_a = _pick_tile(n, block_anchors, 128)
    tn, n_pad_c = _pick_tile(n, block_cands, 8)

    x_a = jnp.pad(xn, ((0, n_pad_a - n), (0, 0))) if n_pad_a != n else xn
    x_c = jnp.pad(xn, ((0, n_pad_c - n), (0, 0))) if n_pad_c != n else xn
    la = jnp.pad(labels, (0, n_pad_a - n), constant_values=-1).reshape(1, n_pad_a)
    lc = jnp.pad(labels, (0, n_pad_c - n), constant_values=-1).reshape(n_pad_c, 1)

    # Explicit VMEM budget: double-buffered input blocks + sim/mask temporaries
    # + lane-padded label blocks + scratch, with 2x headroom (clamped 16-64 MiB).
    mm_bytes = jnp.dtype(matmul_dtype).itemsize
    est = (2 * (tm * d + tn * d) * mm_bytes      # x blocks (double-buffered)
           + 2 * (tm * 4 + tn * 128 * 4)          # label blocks (lane padding)
           + 10 * tn * tm * 4                     # sim block + mask/select temps
           + 4 * 8 * max(tm, 128) * 4             # (1, tm) scratch accumulators
           + 2 * max(tm, 128) * 4)                # output block
    vmem_limit = int(min(64 * 2**20, max(16 * 2**20, 2 * est)))

    kernel = functools.partial(_hard_triplet_kernel, n_valid=n,
                               margin=float(margin))
    losses = pl.pallas_call(
        kernel,
        out_shape=jax.ShapeDtypeStruct((n_pad_a // tm, tm), jnp.float32),
        grid=(n_pad_a // tm, n_pad_c // tn),
        in_specs=[
            pl.BlockSpec((tm, d), lambda i, j: (i, 0)),   # anchor embeddings
            pl.BlockSpec((tn, d), lambda i, j: (j, 0)),   # candidate embeddings
            pl.BlockSpec((1, tm), lambda i, j: (0, i)),   # anchor labels (lanes)
            pl.BlockSpec((tn, 1), lambda i, j: (j, 0)),   # candidate labels
        ],
        out_specs=pl.BlockSpec((1, tm), lambda i, j: (i, 0)),
        scratch_shapes=[pltpu.VMEM((1, tm), jnp.float32),   # running min pos sim
                        pltpu.VMEM((1, tm), jnp.float32)],  # running max neg sim
        compiler_params=pltpu.CompilerParams(
            dimension_semantics=("parallel", "arbitrary"),
            vmem_limit_bytes=vmem_limit),
    )(x_a, x_c, la, lc)

    # AvgNonZeroReducer: mean over strictly-positive per-anchor losses.
    # TODO(synk): tiny scalar epilogue kept as fused jnp ops (padded rows are 0).
    losses = losses.reshape(-1)
    total = jnp.sum(losses)
    nz = jnp.sum((losses > 0).astype(jnp.float32))
    return jnp.where(nz > 0, total / jnp.maximum(nz, 1.0), 0.0)


# ---------------------------------------------------------------------------
# Pure-jnp reference of the same math (sanity check in __main__)
# ---------------------------------------------------------------------------
def _reference_loss(x, labels, margin=MARGIN):
    xn = x / jnp.maximum(jnp.linalg.norm(x, axis=1, keepdims=True), EPS)
    s = jnp.matmul(xn, xn.T, precision=jax.lax.Precision.HIGHEST)
    same = labels[:, None] == labels[None, :]
    eye = jnp.eye(x.shape[0], dtype=bool)
    pos = same & ~eye
    neg = ~same
    ap = jnp.min(jnp.where(pos, s, jnp.inf), axis=1)
    an = jnp.max(jnp.where(neg, s, -jnp.inf), axis=1)
    valid = pos.any(axis=1) & neg.any(axis=1)
    l = jnp.where(valid, jnp.maximum(an - ap + margin, 0.0), 0.0)
    nz = jnp.sum(l > 0)
    return jnp.where(nz > 0, jnp.sum(l) / jnp.maximum(nz, 1), 0.0)


if __name__ == "__main__":
    key = jax.random.PRNGKey(0)
    k1, k2, k3, k4 = jax.random.split(key, 4)

    # Case 1: module-sized problem (batch 16, sz_embed 32), single tile.
    X1 = jax.random.normal(k1, (16, 32), dtype=jnp.float32)
    T1 = jax.random.randint(k2, (16,), 0, 4, dtype=jnp.int32)
    out1 = jax.block_until_ready(jax.jit(triplet_loss)(X1, T1))
    ref1 = jax.block_until_ready(_reference_loss(X1, T1))
    assert out1.shape == () and bool(jnp.isfinite(out1))
    assert abs(float(out1) - float(ref1)) < 1e-4, (float(out1), float(ref1))

    # Case 2: multi-tile grid (2 anchor x 2 candidate tiles) exercising the
    # running min/max accumulators and the ragged-batch padding path.
    X2 = jax.random.normal(k3, (200, 32), dtype=jnp.float32)
    T2 = jax.random.randint(k4, (200,), 0, 8, dtype=jnp.int32)
    f2 = jax.jit(functools.partial(triplet_loss, block_anchors=128,
                                   block_cands=128))
    out2 = jax.block_until_ready(f2(X2, T2))
    ref2 = jax.block_until_ready(_reference_loss(X2, T2))
    assert abs(float(out2) - float(ref2)) < 1e-4, (float(out2), float(ref2))

    # Case 3: bf16 MXU throughput path (f32 accumulate); looser tolerance since
    # bf16 similarities can reorder near-tied hard pairs.
    f3 = jax.jit(functools.partial(triplet_loss, matmul_dtype=jnp.bfloat16,
                                   block_anchors=128, block_cands=128))
    out3 = jax.block_until_ready(f3(X2, T2))
    assert bool(jnp.isfinite(out3))
    assert abs(float(out3) - float(ref2)) < 5e-2, (float(out3), float(ref2))

    print("KERNEL_OK")
</pallas_src>

<mosaic_0001>
module attributes {stable_mosaic.version = 11 : i64} {
  func.func @_hard_triplet_kernel(%arg0: i32, %arg1: i32, %arg2: memref<16x32xf32, #tpu.memory_space<vmem>>, %arg3: memref<16x32xf32, #tpu.memory_space<vmem>>, %arg4: memref<1x16xi32, #tpu.memory_space<vmem>>, %arg5: memref<16x1xi32, #tpu.memory_space<vmem>>, %arg6: memref<1x16xf32, #tpu.memory_space<vmem>>, %arg7: memref<1x16xf32, #tpu.memory_space<vmem>>, %arg8: memref<1x16xf32, #tpu.memory_space<vmem>>) attributes {dimension_semantics = [#tpu.dimension_semantics<parallel>, #tpu.dimension_semantics<arbitrary>], iteration_bounds = array<i64: 1, 1>, scalar_prefetch = 0 : i64, scratch_operands = 2 : i64, tpu.core_type = #tpu.core_type<tc>, window_params = [{transform_indices = @transform_0, window_bounds = array<i64: 16, 32>}, {transform_indices = @transform_1, window_bounds = array<i64: 16, 32>}, {transform_indices = @transform_2, window_bounds = array<i64: 1, 16>}, {transform_indices = @transform_3, window_bounds = array<i64: 16, 1>}, {transform_indices = @transform_4, window_bounds = array<i64: 1, 16>}]} {
    %c0_i32 = arith.constant 0 : i32
    %0 = arith.cmpi eq, %arg1, %c0_i32 : i32
    %1 = arith.extui %0 : i1 to i32
    %c0_i32_0 = arith.constant 0 : i32
    %2 = arith.cmpi ne, %1, %c0_i32_0 : i32
    scf.if %2 {
      %cst_25 = arith.constant 1.000000e+30 : f32
      %45 = vector.broadcast %cst_25 : f32 to vector<1x16xf32>
      %c0_26 = arith.constant 0 : index
      %c0_27 = arith.constant 0 : index
      %46 = vector.load %arg7[%c0_26, %c0_27] : memref<1x16xf32, #tpu.memory_space<vmem>>, vector<1x16xf32>
      tpu.vector_store %arg7[%c0_26, %c0_27], %45 {strides = array<i32>} : memref<1x16xf32, #tpu.memory_space<vmem>>, vector<1x16xf32>,
      %cst_28 = arith.constant -1.000000e+30 : f32
      %47 = vector.broadcast %cst_28 : f32 to vector<1x16xf32>
      %c0_29 = arith.constant 0 : index
      %c0_30 = arith.constant 0 : index
      %48 = vector.load %arg8[%c0_29, %c0_30] : memref<1x16xf32, #tpu.memory_space<vmem>>, vector<1x16xf32>
      tpu.vector_store %arg8[%c0_29, %c0_30], %47 {strides = array<i32>} : memref<1x16xf32, #tpu.memory_space<vmem>>, vector<1x16xf32>,
    } else {
    }
    %c0 = arith.constant 0 : index
    %c0_1 = arith.constant 0 : index
    %3 = vector.load %arg3[%c0, %c0_1] : memref<16x32xf32, #tpu.memory_space<vmem>>, vector<16x32xf32>
    %c0_2 = arith.constant 0 : index
    %c0_3 = arith.constant 0 : index
    %4 = vector.load %arg2[%c0_2, %c0_3] : memref<16x32xf32, #tpu.memory_space<vmem>>, vector<16x32xf32>
    %cst = arith.constant dense<0.000000e+00> : vector<16x16xf32>
    %5 = tpu.matmul %3, %4, %cst {dimension_numbers = #tpu.dot_dimension_numbers<[1], [1], [0], [0], [0, 0, 1, 0], [], []>} : vector<16x32xf32>, vector<16x32xf32>, vector<16x16xf32> -> vector<16x16xf32>
    %c0_4 = arith.constant 0 : index
    %c0_5 = arith.constant 0 : index
    %6 = vector.load %arg4[%c0_4, %c0_5] : memref<1x16xi32, #tpu.memory_space<vmem>>, vector<1x16xi32>
    %c0_6 = arith.constant 0 : index
    %c0_7 = arith.constant 0 : index
    %7 = vector.load %arg5[%c0_6, %c0_7] : memref<16x1xi32, #tpu.memory_space<vmem>>, vector<16x1xi32>
    %8 = vector.broadcast %7 : vector<16x1xi32> to vector<16x16xi32>
    %9 = vector.broadcast %6 : vector<1x16xi32> to vector<16x16xi32>
    %10 = arith.cmpi eq, %8, %9 : vector<16x16xi32>
    %c16_i32 = arith.constant 16 : i32
    %11 = arith.muli %arg1, %c16_i32 : i32
    %12 = tpu.iota {dimensions = array<i32: 0>} : vector<16x1xi32>
    %13 = vector.broadcast %11 : i32 to vector<16x1xi32>
    %14 = arith.addi %13, %12 : vector<16x1xi32>
    %c16_i32_8 = arith.constant 16 : i32
    %15 = arith.muli %arg0, %c16_i32_8 : i32
    %16 = tpu.iota {dimensions = array<i32: 1>} : vector<1x16xi32>
    %17 = vector.broadcast %15 : i32 to vector<1x16xi32>
    %18 = arith.addi %17, %16 : vector<1x16xi32>
    %19 = vector.broadcast %14 : vector<16x1xi32> to vector<16x16xi32>
    %20 = vector.broadcast %18 : vector<1x16xi32> to vector<16x16xi32>
    %21 = arith.cmpi ne, %19, %20 : vector<16x16xi32>
    %22 = arith.andi %10, %21 : vector<16x16xi1>
    %cst_9 = arith.constant dense<true> : vector<16x16xi1>
    %23 = arith.xori %10, %cst_9 : vector<16x16xi1>
    %c0_i32_10 = arith.constant 0 : i32
    %24 = vector.broadcast %c0_i32_10 : i32 to vector<16x1xi32>
    %25 = arith.cmpi sge, %7, %24 : vector<16x1xi32>
    %26 = vector.broadcast %25 : vector<16x1xi1> to vector<16x16xi1>
    %27 = arith.andi %23, %26 : vector<16x16xi1>
    %c0_11 = arith.constant 0 : index
    %c0_12 = arith.constant 0 : index
    %28 = vector.load %arg7[%c0_11, %c0_12] : memref<1x16xf32, #tpu.memory_space<vmem>>, vector<1x16xf32>
    %cst_13 = arith.constant 1.000000e+30 : f32
    %29 = vector.broadcast %cst_13 : f32 to vector<16x16xf32>
    %30 = arith.select %22, %5, %29 : vector<16x16xi1>, vector<16x16xf32>
    %cst_14 = arith.constant dense<0x7F800000> : vector<16xf32>
    %31 = vector.multi_reduction <minimumf>, %30, %cst_14 [0] : vector<16x16xf32> to vector<16xf32>
    %32 = vector.shape_cast %31 : vector<16xf32> to vector<1x16xf32>
    %33 = arith.minimumf %28, %32 : vector<1x16xf32>
    %c0_15 = arith.constant 0 : index
    %c0_16 = arith.constant 0 : index
    %34 = vector.load %arg7[%c0_15, %c0_16] : memref<1x16xf32, #tpu.memory_space<vmem>>, vector<1x16xf32>
    tpu.vector_store %arg7[%c0_15, %c0_16], %33 {strides = array<i32>} : memref<1x16xf32, #tpu.memory_space<vmem>>, vector<1x16xf32>,
    %c0_17 = arith.constant 0 : index
    %c0_18 = arith.constant 0 : index
    %35 = vector.load %arg8[%c0_17, %c0_18] : memref<1x16xf32, #tpu.memory_space<vmem>>, vector<1x16xf32>
    %cst_19 = arith.constant -1.000000e+30 : f32
    %36 = vector.broadcast %cst_19 : f32 to vector<16x16xf32>
    %37 = arith.select %27, %5, %36 : vector<16x16xi1>, vector<16x16xf32>
    %cst_20 = arith.constant dense<0xFF800000> : vector<16xf32>
    %38 = vector.multi_reduction <maximumf>, %37, %cst_20 [0] : vector<16x16xf32> to vector<16xf32>
    %39 = vector.shape_cast %38 : vector<16xf32> to vector<1x16xf32>
    %40 = arith.maximumf %35, %39 : vector<1x16xf32>
    %c0_21 = arith.constant 0 : index
    %c0_22 = arith.constant 0 : index
    %41 = vector.load %arg8[%c0_21, %c0_22] : memref<1x16xf32, #tpu.memory_space<vmem>>, vector<1x16xf32>
    tpu.vector_store %arg8[%c0_21, %c0_22], %40 {strides = array<i32>} : memref<1x16xf32, #tpu.memory_space<vmem>>, vector<1x16xf32>,
    %c0_i32_23 = arith.constant 0 : i32
    %42 = arith.cmpi eq, %arg1, %c0_i32_23 : i32
    %43 = arith.extui %42 : i1 to i32
    %c0_i32_24 = arith.constant 0 : i32
    %44 = arith.cmpi ne, %43, %c0_i32_24 : i32
    scf.if %44 {
      %c0_25 = arith.constant 0 : index
      %c0_26 = arith.constant 0 : index
      %45 = vector.load %arg7[%c0_25, %c0_26] : memref<1x16xf32, #tpu.memory_space<vmem>>, vector<1x16xf32>
      %c0_27 = arith.constant 0 : index
      %c0_28 = arith.constant 0 : index
      %46 = vector.load %arg8[%c0_27, %c0_28] : memref<1x16xf32, #tpu.memory_space<vmem>>, vector<1x16xf32>
      %cst_29 = arith.constant 5.000000e+29 : f32
      %47 = vector.broadcast %cst_29 : f32 to vector<1x16xf32>
      %48 = arith.cmpf olt, %45, %47 : vector<1x16xf32>
      %cst_30 = arith.constant -5.000000e+29 : f32
      %49 = vector.broadcast %cst_30 : f32 to vector<1x16xf32>
      %50 = arith.cmpf ogt, %46, %49 : vector<1x16xf32>
      %51 = arith.andi %48, %50 : vector<1x16xi1>
      %c16_i32_31 = arith.constant 16 : i32
      %52 = vector.broadcast %c16_i32_31 : i32 to vector<1x16xi32>
      %53 = arith.cmpi slt, %18, %52 : vector<1x16xi32>
      %54 = arith.andi %51, %53 : vector<1x16xi1>
      %55 = arith.subf %46, %45 : vector<1x16xf32>
      %cst_32 = arith.constant 5.000000e-02 : f32
      %56 = vector.broadcast %cst_32 : f32 to vector<1x16xf32>
      %57 = arith.addf %55, %56 : vector<1x16xf32>
      %cst_33 = arith.constant 0.000000e+00 : f32
      %58 = vector.broadcast %cst_33 : f32 to vector<1x16xf32>
      %59 = arith.maximumf %57, %58 : vector<1x16xf32>
      %cst_34 = arith.constant 0.000000e+00 : f32
      %60 = vector.broadcast %cst_34 : f32 to vector<1x16xf32>
      %61 = arith.select %54, %59, %60 : vector<1x16xi1>, vector<1x16xf32>
      %c0_35 = arith.constant 0 : index
      %c0_36 = arith.constant 0 : index
      %62 = vector.load %arg6[%c0_35, %c0_36] : memref<1x16xf32, #tpu.memory_space<vmem>>, vector<1x16xf32>
      tpu.vector_store %arg6[%c0_35, %c0_36], %61 {strides = array<i32>} : memref<1x16xf32, #tpu.memory_space<vmem>>, vector<1x16xf32>,
    } else {
    }
    return
  }
  func.func @transform_0(%arg0: i32, %arg1: i32) -> (i32, i32) {
    %c0_i32 = arith.constant 0 : i32
    %c0_i32_0 = arith.constant 0 : i32
    return %arg0, %c0_i32 : i32, i32
  }
  func.func @transform_1(%arg0: i32, %arg1: i32) -> (i32, i32) {
    %c0_i32 = arith.constant 0 : i32
    %c0_i32_0 = arith.constant 0 : i32
    return %arg1, %c0_i32 : i32, i32
  }
  func.func @transform_2(%arg0: i32, %arg1: i32) -> (i32, i32) {
    %c0_i32 = arith.constant 0 : i32
    %c0_i32_0 = arith.constant 0 : i32
    return %c0_i32, %arg0 : i32, i32
  }
  func.func @transform_3(%arg0: i32, %arg1: i32) -> (i32, i32) {
    %c0_i32 = arith.constant 0 : i32
    %c0_i32_0 = arith.constant 0 : i32
    return %arg1, %c0_i32 : i32, i32
  }
  func.func @transform_4(%arg0: i32, %arg1: i32) -> (i32, i32) {
    %c0_i32 = arith.constant 0 : i32
    %c0_i32_0 = arith.constant 0 : i32
    return %arg0, %c0_i32 : i32, i32
  }
}

</mosaic_0001>

<llo_original>
// kernel: triplet_loss.1
$region0: #{triplet_loss.1}
  #allocation0 [shape = 'u32[]', space=smem, size = 0x4, offset = 0x4, fixed_abs, tag = 'smem constant byte address 0x4 - core index']
  #allocation1 [shape = 'u32[144,128]{1,0:T(1,128)}', space=vmem, size = 0x12000, scoped, tag = 'internal scratch']
  #allocation2 [shape = 'f32[1,16]{1,0:T(1,128)}', space=vmem, size = 0x200, scoped, tag = 'scratch operand']
  #allocation3 [shape = 'f32[1,16]{1,0:T(1,128)}', space=vmem, size = 0x200, scoped, tag = 'scratch operand']
  %s0 = inlined_call_operand.vmem [shape: f32[16,32], index: 0, kind: input, shape index: {}, may-alias: {0,1}]
  %s1 = inlined_call_operand.vmem [shape: f32[16,32], index: 1, kind: input, shape index: {}, may-alias: {0,1}]
  %s2 = inlined_call_operand.vmem [shape: s32[1,16], index: 2, kind: input, shape index: {}]
  %s3 = inlined_call_operand.vmem [shape: s32[16,1], index: 3, kind: input, shape index: {}]
  %s4 = inlined_call_operand.vmem [shape: f32[1,16], index: 4, kind: output, shape index: {}]
  %s5 = sld [smem:[#allocation0]]
  $region34: #{triplet_loss.1} parent=0
    _
  %s7 = ssub.s32 1, %s5
  %s8 = scalar_select 0, %s7, %s5
  // Predicated region
  $region2: #{triplet_loss.1} parent=0 // pred_check
    _
  $region3: #{triplet_loss.1} parent=0 // pred_check_branch
    %10 = sbr.rel (0) target = $region5
  $region4: #{triplet_loss.1} parent=0 // pred_region
    _
  $region5: #{triplet_loss.1} parent=0 // pred_fallthru
    _
  // Predicated region
  $region6: #{triplet_loss.1} parent=0 // pred_check
    _
  $region7: #{triplet_loss.1} parent=0 // pred_check_branch
    %12 = sbr.rel (0) target = $region9
  $region8: #{triplet_loss.1} parent=0 // pred_region
    _
  $region9: #{triplet_loss.1} parent=0 // pred_fallthru
    _
  // Predicated region
  $region10: #{triplet_loss.1} parent=0 // pred_check
    _
  $region11: #{triplet_loss.1} parent=0 // pred_check_branch
    %14 = sbr.rel (0) target = $region13
  $region12: #{triplet_loss.1} parent=0 // pred_region
    _
  $region13: #{triplet_loss.1} parent=0 // pred_fallthru
    _
  // Predicated region
  $region14: #{triplet_loss.1} parent=0 // pred_check
    _
  $region15: #{triplet_loss.1} parent=0 // pred_check_branch
    %16 = sbr.rel (0) target = $region17
  $region16: #{triplet_loss.1} parent=0 // pred_region
    _
  $region17: #{triplet_loss.1} parent=0 // pred_fallthru
    _
  %p17 = scmp.eq.s32.totalorder 0, 0
  // Predicated region
  $region18: #{triplet_loss.1} parent=0 // pred_check
    %p18 = pneg %p17
  $region19: #{triplet_loss.1} parent=0 // pred_check_branch
    %20 = sbr.rel (%p18) target = $region21
  $region20: #{triplet_loss.1} parent=0 // pred_region
    %vm21 = vcmask 122880
    %22 = vst.msk [vmem:[#allocation2] sm:$0x1] %vm21, 1e+30
    %23 = vst.msk [vmem:[#allocation3] sm:$0x1] %vm21, -1e+30
  $region21: #{triplet_loss.1} parent=0 // pred_fallthru
    _
  %v24 = vld [vmem:[%s1] sm:$0xff]
  %v25 = vld [vmem:[%s1 + $0x8] sm:$0xff]
  %v26 = vld [vmem:[%s0] sm:$0xff]
  %v27 = vld [vmem:[%s0 + $0x8] sm:$0xff]
  %vm28 = vcmask 261120
  %v30 = vsel %vm28, %v24, 0
  %v33 = vsel %vm28, %v25, 0
  %v36 = vsel %vm28, %v26, 0
  %v39 = vsel %vm28, %v27, 0
  %41 = vmatprep.subr.mxu0 0.0
  %42 = vmatpush1.xpose.msra.mxu0 %v36
  %43 = vmatprep.subr.mxu0 0.0
  %44 = vmatpush1.xpose.msra.mxu0 %v39
  %45 = vmatprep.subr.mxu0 0.0
  %46 = vmatpush1.xpose.msra.mxu0 0.0
  %47 = vmatprep.subr.mxu0 0.0
  %48 = vmatpush1.xpose.msra.mxu0 0.0
  %49 = vmatprep.subr.mxu0 0.0
  %50 = vmatpush1.xpose.msra.mxu0 0.0
  %51 = vmatprep.subr.mxu0 0.0
  %52 = vmatpush1.xpose.msra.mxu0 0.0
  %53 = vmatprep.subr.mxu0 0.0
  %54 = vmatpush1.xpose.msra.mxu0 0.0
  %55 = vmatprep.subr.mxu0 0.0
  %56 = vmatpush1.xpose.msra.mxu0 0.0
  %57 = vmatprep.subr.mxu0 0.0
  %58 = vmatpush1.xpose.msra.mxu0 0.0
  %59 = vmatprep.subr.mxu0 0.0
  %60 = vmatpush1.xpose.msra.mxu0 0.0
  %61 = vmatprep.subr.mxu0 0.0
  %62 = vmatpush1.xpose.msra.mxu0 0.0
  %63 = vmatprep.subr.mxu0 0.0
  %64 = vmatpush1.xpose.msra.mxu0 0.0
  %65 = vmatprep.subr.mxu0 0.0
  %66 = vmatpush1.xpose.msra.mxu0 0.0
  %67 = vmatprep.subr.mxu0 0.0
  %68 = vmatpush1.xpose.msra.mxu0 0.0
  %69 = vmatprep.subr.mxu0 0.0
  %70 = vmatpush1.xpose.msra.mxu0 0.0
  %71 = vmatprep.subr.mxu0 0.0
  %72 = vmatpush1.xpose.msra.mxu0 0.0
  %73 = vmatprep.subr.mxu0 0.0
  %74 = vmatpush1.xpose.msra.mxu0 0.0
  %75 = vmatprep.subr.mxu0 0.0
  %76 = vmatpush1.xpose.msra.mxu0 0.0
  %77 = vmatprep.subr.mxu0 0.0
  %78 = vmatpush1.xpose.msra.mxu0 0.0
  %79 = vmatprep.subr.mxu0 0.0
  %80 = vmatpush1.xpose.msra.mxu0 0.0
  %81 = vmatprep.subr.mxu0 0.0
  %82 = vmatpush1.xpose.msra.mxu0 0.0
  %83 = vmatprep.subr.mxu0 0.0
  %84 = vmatpush1.xpose.msra.mxu0 0.0
  %85 = vmatprep.subr.mxu0 0.0
  %86 = vmatpush1.xpose.msra.mxu0 0.0
  %87 = vmatprep.subr.mxu0 0.0
  %88 = vmatpush1.xpose.msra.mxu0 0.0
  %89 = vmatprep.subr.mxu0 0.0
  %90 = vmatpush1.xpose.msra.mxu0 0.0
  %91 = vmatprep.subr.mxu0 0.0
  %92 = vmatpush1.xpose.msra.mxu0 0.0
  %93 = vmatprep.subr.mxu0 0.0
  %94 = vmatpush1.xpose.msra.mxu0 0.0
  %95 = vmatprep.subr.mxu0 0.0
  %96 = vmatpush1.xpose.msra.mxu0 0.0
  %97 = vmatprep.subr.mxu0 0.0
  %98 = vmatpush1.xpose.msra.mxu0 0.0
  %99 = vmatprep.subr.mxu0 0.0
  %100 = vmatpush1.xpose.msra.mxu0 0.0
  %101 = vmatprep.subr.mxu0 0.0
  %102 = vmatpush1.xpose.msra.mxu0 0.0
  %103 = vmatprep.subr.mxu0 0.0
  %104 = vmatpush1.xpose.msra.mxu0 0.0
  %105 = vmatprep.mubr.f32.mxu0 0.0
  %106 = vmatmul.mubr.f32.gmra.mrb[0].mxu0 %v30
  %v107 = vpop.f32.mrb[0].mxu0
  %v108 = vadd.f32 0.0, %v107
  %v109 = vpop.f32.mrb[0].mxu0
  %110 = vmatprep.mubr.f32.mxu0 0.0
  %111 = vmatmul.mubr.f32.gmra.mrb[0].mxu0 %v33
  %v112 = vpop.f32.mrb[0].mxu0
  %v113 = vadd.f32 0.0, %v112
  %v114 = vpop.f32.mrb[0].mxu0
  %115 = vdwg.mxu0
  %v116 = vld [vmem:[%s2] sm:$0x1]
  %v117 = vld [vmem:[%s3] sm:$0xff]
  %v118 = vld [vmem:[%s3 + $0x8] sm:$0xff]
  %119 = vset.pattern.permute.xlu0 0
  %120 = vperm.xlu0 %119, %v117
  %v121 = vpop.permute.xlu0 %120
  %122 = vset.pattern.permute.xlu0 0
  %123 = vperm.xlu0 %122, %v118
  %v124 = vpop.permute.xlu0 %123
  %v125 = vlaneseq
  %v126 = vshrl.u32 %v125, 7
  %v127 = vsub.s32 0, %v126
  %v128 = vrot.slane %v116, %v127
  %vm129 = vcmp.eq.s32.totalorder %v121, %v128
  %vm130 = vcmp.eq.s32.totalorder %v124, %v128
  %s131 = smul.u32 0, 16
  %v132 = vlaneseq
  %v133 = vshrl.u32 %v132, 7
  %v134 = vadd.s32 %v133, 8
  %v135 = vstv %s131
  %v136 = vadd.s32 %v135, %v133
  %v137 = vadd.s32 %v135, %v134
  %s138 = smul.u32 0, 16
  %v139 = vlaneseq
  %v140 = vand.u32 %v139, 127
  %v141 = vstv %s138
  %v142 = vadd.s32 %v141, %v140
  %vm143 = vcmp.ne.s32.totalorder %v136, %v142
  %vm144 = vcmp.ne.s32.totalorder %v137, %v142
  %vm145 = vmand %vm129, %vm143
  %vm146 = vmand %vm130, %vm144
  %vm147 = vmxor %vm129, 1
  %vm148 = vmxor %vm130, 1
  %vm149 = vcmp.ge.s32.totalorder %v117, 0
  %vm150 = vcmp.ge.s32.totalorder %v118, 0
  %v151 = vsel %vm149, 1, 0
  %v152 = vsel %vm150, 1, 0
  %153 = vset.pattern.permute.xlu0 0
  %154 = vperm.xlu0 %153, %v151
  %v155 = vpop.permute.xlu0 %154
  %156 = vset.pattern.permute.xlu0 0
  %157 = vperm.xlu0 %156, %v152
  %v158 = vpop.permute.xlu0 %157
  %vm159 = vcmp.eq.s32.totalorder %v155, 1
  %vm160 = vcmp.eq.s32.totalorder %v158, 1
  %vm161 = vmand %vm147, %vm159
  %vm162 = vmand %vm148, %vm160
  %v163 = vld [vmem:[#allocation2] sm:$0x1]
  %v164 = vsel %vm145, %v108, 1e+30
  %v165 = vsel %vm146, %v113, 1e+30
  %vm166 = vcmask 130048
  %v167 = vsel %vm166, %v164, inf
  %v168 = vsel %vm166, %v165, inf
  %v169 = vmin.f32 %v167, %v168
  %v170 = vrot.slane %v169, 4
  %v171 = vmin.f32 %v169, %v170
  %v172 = vrot.slane %v171, 2
  %v173 = vmin.f32 %v171, %v172
  %v174 = vrot.slane %v173, 1
  %v175 = vmin.f32 %v173, %v174
  %v176 = vmin.f32 %v163, %v175
  %vm177 = vcmask 122880
  %178 = vst.msk [vmem:[#allocation2] sm:$0x1] %vm177, %v176
  %v179 = vld [vmem:[#allocation3] sm:$0x1]
  %v180 = vsel %vm161, %v108, -1e+30
  %v181 = vsel %vm162, %v113, -1e+30
  %v182 = vsel %vm166, %v180, -inf
  %v183 = vsel %vm166, %v181, -inf
  %v184 = vmax.f32 %v182, %v183
  %v185 = vrot.slane %v184, 4
  %v186 = vmax.f32 %v184, %v185
  %v187 = vrot.slane %v186, 2
  %v188 = vmax.f32 %v186, %v187
  %v189 = vrot.slane %v188, 1
  %v190 = vmax.f32 %v188, %v189
  %v191 = vmax.f32 %v179, %v190
  %192 = vst.msk [vmem:[#allocation3] sm:$0x1] %vm177, %v191
  // Predicated region
  $region22: #{triplet_loss.1} parent=0 // pred_check
    %p193 = pneg %p17
  $region23: #{triplet_loss.1} parent=0 // pred_check_branch
    %195 = sbr.rel (%p193) target = $region25
  $region24: #{triplet_loss.1} parent=0 // pred_region
    %v196 = vld [vmem:[#allocation2] sm:$0x1]
    %v197 = vld [vmem:[#allocation3] sm:$0x1]
    %vm198 = vcmp.lt.f32.partialorder %v196, 5e+29
    %vm199 = vcmp.gt.f32.partialorder %v197, -5e+29
    %vm200 = vmand %vm198, %vm199
    %vm201 = vcmp.lt.s32.totalorder %v142, 16
    %vm202 = vmand %vm200, %vm201
    %v203 = vsub.f32 %v197, %v196
    %v204 = vadd.f32 %v203, 0.05
    %v205 = vmax.f32 %v204, 0.0
    %v206 = vsel %vm202, %v205, 0.0
    %207 = vst.msk [vmem:[%s4] sm:$0x1] %vm177, %v206
  $region25: #{triplet_loss.1} parent=0 // pred_fallthru
    _
  // Predicated region
  $region26: #{triplet_loss.1} parent=0 // pred_check
    _
  $region27: #{triplet_loss.1} parent=0 // pred_check_branch
    %209 = sbr.rel (0) target = $region29
  $region28: #{triplet_loss.1} parent=0 // pred_region
    _
  $region29: #{triplet_loss.1} parent=0 // pred_fallthru
    _
  // Predicated region
  $region30: #{triplet_loss.1} parent=0 // pred_check
    _
  $region31: #{triplet_loss.1} parent=0 // pred_check_branch
    %211 = sbr.rel (0) target = $region33
  $region32: #{triplet_loss.1} parent=0 // pred_region
    _
  $region33: #{triplet_loss.1} parent=0 // pred_fallthru
    _

</llo_original>
